<compile_context>
chip_gen: v7x
topology: tpu7x:2x2x1
jax: 0.10.0
libtpu: 0.0.40
codegen_flags: <defaults>
</compile_context>

<pallas_src>
import functools
import math

import jax
import jax.numpy as jnp
from jax import lax
from jax.experimental import pallas as pl
from jax.experimental.pallas import tpu as pltpu

NEG_INF = -1e30  # large finite negative: no exp(-inf - -inf) = NaN hazard


def _round_up(n: int, m: int) -> int:
    return ((n + m - 1) // m) * m


# ----------------------------- QKV projection kernel -----------------------------
def _qkv_proj_kernel(x_ref, wq_ref, wk_ref, wv_ref, q_ref, k_ref, v_ref, *, scale):
    x = x_ref[...]
    q = jnp.dot(x, wq_ref[...], preferred_element_type=jnp.float32)
    q_ref[...] = (q * scale).astype(q_ref.dtype)  # fold 1/sqrt(d_out_kq) into Q once
    k_ref[...] = jnp.dot(x, wk_ref[...],
                         preferred_element_type=jnp.float32).astype(k_ref.dtype)
    v_ref[...] = jnp.dot(x, wv_ref[...],
                         preferred_element_type=jnp.float32).astype(v_ref.dtype)


def _project_qkv(x_p, wq_p, wk_p, wv_p, *, tile, scale):
    seq_pad, d_in_p = x_p.shape
    d_kq_p = wq_p.shape[1]
    d_v_p = wv_p.shape[1]
    dtype = x_p.dtype
    n = seq_pad // tile

    kernel = functools.partial(_qkv_proj_kernel, scale=scale)
    return pl.pallas_call(
        kernel,
        out_shape=(jax.ShapeDtypeStruct((seq_pad, d_kq_p), dtype),
                   jax.ShapeDtypeStruct((seq_pad, d_kq_p), dtype),
                   jax.ShapeDtypeStruct((seq_pad, d_v_p), dtype)),
        grid_spec=pltpu.PrefetchScalarGridSpec(
            num_scalar_prefetch=0,
            grid=(n,),
            in_specs=[
                pl.BlockSpec((tile, d_in_p), lambda i: (i, 0)),
                pl.BlockSpec((d_in_p, d_kq_p), lambda i: (0, 0)),   # weights resident
                pl.BlockSpec((d_in_p, d_kq_p), lambda i: (0, 0)),
                pl.BlockSpec((d_in_p, d_v_p), lambda i: (0, 0)),
            ],
            out_specs=[
                pl.BlockSpec((tile, d_kq_p), lambda i: (i, 0)),
                pl.BlockSpec((tile, d_kq_p), lambda i: (i, 0)),
                pl.BlockSpec((tile, d_v_p), lambda i: (i, 0)),
            ],
        ),
        compiler_params=pltpu.CompilerParams(
            dimension_semantics=("parallel",),
            vmem_limit_bytes=48 * 1024 * 1024),
    )(x_p, wq_p, wk_p, wv_p)


# ----------------------------- flash attention kernel -----------------------------
def _flash_attn_kernel(q_ref, k_ref, v_ref,       # inputs (projected, Q pre-scaled)
                       o_ref,                      # output
                       m_scr, l_scr, acc_scr,      # scratch
                       *, causal: bool, tq: int, tk: int,
                       seq_len: int, need_len_mask: bool):
    qi = pl.program_id(0)
    kv = pl.program_id(1)

    @pl.when(kv == 0)
    def _init():
        m_scr[...] = jnp.full(m_scr.shape, NEG_INF, dtype=m_scr.dtype)
        l_scr[...] = jnp.zeros(l_scr.shape, dtype=l_scr.dtype)
        acc_scr[...] = jnp.zeros(acc_scr.shape, dtype=acc_scr.dtype)

    def _tile_update(apply_mask: bool):
        # Logits: contract Q and K on the head dim (no explicit transpose).
        s = lax.dot_general(q_ref[...], k_ref[...],
                            dimension_numbers=(((1,), (1,)), ((), ())),
                            preferred_element_type=jnp.float32)  # (tq, tk)
        if apply_mask:
            col = kv * tk + lax.broadcasted_iota(jnp.int32, (tq, tk), 1)
            mask = None
            if causal:
                row = qi * tq + lax.broadcasted_iota(jnp.int32, (tq, tk), 0)
                mask = col > row
            if need_len_mask:
                lm = col >= seq_len
                mask = lm if mask is None else (mask | lm)
            s = jnp.where(mask, NEG_INF, s)

        # Online softmax update.
        m_prev = m_scr[...]
        m_new = jnp.maximum(m_prev, jnp.max(s, axis=-1, keepdims=True))
        alpha = jnp.exp(m_prev - m_new)
        p = jnp.exp(s - m_new)
        l_scr[...] = alpha * l_scr[...] + jnp.sum(p, axis=-1, keepdims=True)
        acc_scr[...] = alpha * acc_scr[...] + jnp.dot(
            p.astype(v_ref.dtype), v_ref[...], preferred_element_type=jnp.float32)
        m_scr[...] = m_new

    # Which tiles actually need a mask; interior tiles take a mask-free fast path.
    mask_cond = None
    if causal:
        mask_cond = kv * tk + (tk - 1) > qi * tq              # tile straddles diagonal
    if need_len_mask:
        len_cond = (kv + 1) * tk > seq_len                    # tile contains padded cols
        mask_cond = len_cond if mask_cond is None else (mask_cond | len_cond)

    # Causal: skip KV tiles lying entirely above the diagonal.
    visible = (kv * tk <= qi * tq + (tq - 1)) if causal else None

    if mask_cond is None:
        if visible is None:
            _tile_update(False)
        else:
            pl.when(visible)(lambda: _tile_update(False))
    else:
        masked = mask_cond if visible is None else (visible & mask_cond)
        unmasked = (jnp.logical_not(mask_cond) if visible is None
                    else (visible & jnp.logical_not(mask_cond)))
        pl.when(masked)(lambda: _tile_update(True))
        pl.when(unmasked)(lambda: _tile_update(False))

    @pl.when(kv == pl.num_programs(1) - 1)
    def _finalize():
        l = l_scr[...]
        l = jnp.where(l == 0.0, 1.0, l)  # guard (rows with no contributing tile)
        o_ref[...] = (acc_scr[...] / l).astype(o_ref.dtype)  # exact normalization


# ----------------------------------- wrapper -----------------------------------
def self_attention(x, w_query, w_key, w_value, *, causal: bool = False,
                   q_block: int = 256, kv_block: int = 256):
    """Pallas TPU implementation of SelfAttention.forward (flash-style).

    q_block / kv_block: tile sizes (multiples of 8). 256x256 targets v6e/v7x's
    256-wide MXU; use kv_block=128 on v5e. They shrink automatically for small seq.
    """
    seq, d_in = x.shape
    d_kq = w_query.shape[1]
    d_v = w_value.shape[1]
    dtype = x.dtype

    seq8 = _round_up(seq, 8)
    tq = min(_round_up(q_block, 8), seq8)
    tk = min(_round_up(kv_block, 8), seq8)
    seq_pad = _round_up(seq, math.lcm(tq, tk))
    d_in_p = _round_up(d_in, 128)
    d_kq_p = _round_up(d_kq, 128)
    d_v_p = _round_up(d_v, 128)
    need_len_mask = seq_pad != seq

    def _pad2(a, rows, cols):
        pr, pc = rows - a.shape[0], cols - a.shape[1]
        if pr == 0 and pc == 0:
            return a
        return jnp.pad(a, ((0, pr), (0, pc)))

    x_p = _pad2(x, seq_pad, d_in_p)
    wq_p = _pad2(w_query, d_in_p, d_kq_p)
    wk_p = _pad2(w_key, d_in_p, d_kq_p)
    wv_p = _pad2(w_value, d_in_p, d_v_p)

    scale = 1.0 / (float(d_kq) ** 0.5)  # scale uses the *original* d_out_kq

    # 1) Project Q (pre-scaled), K, V exactly once, tiled over the sequence.
    q_p, k_p, v_p = _project_qkv(x_p, wq_p, wk_p, wv_p, tile=tq, scale=scale)

    n_q = seq_pad // tq
    n_kv = seq_pad // tk

    kernel = functools.partial(
        _flash_attn_kernel, causal=causal, tq=tq, tk=tk,
        seq_len=seq, need_len_mask=need_len_mask)

    if causal:
        def kv_index(qi, kv):
            # Clamp so fully-masked (skipped) KV tiles reuse the resident block -> no DMA.
            return (jnp.minimum(kv, (qi * tq + tq - 1) // tk), 0)
    else:
        def kv_index(qi, kv):
            return (kv, 0)

    grid_spec = pltpu.PrefetchScalarGridSpec(
        num_scalar_prefetch=0,
        grid=(n_q, n_kv),
        in_specs=[
            # Q tile: resident across the kv loop (same block index for all kv)
            pl.BlockSpec((tq, d_kq_p), lambda qi, kv: (qi, 0)),
            # K / V tiles: streamed along kv (double-buffered by Pallas)
            pl.BlockSpec((tk, d_kq_p), kv_index),
            pl.BlockSpec((tk, d_v_p), kv_index),
        ],
        out_specs=pl.BlockSpec((tq, d_v_p), lambda qi, kv: (qi, 0)),
        scratch_shapes=[
            pltpu.VMEM((tq, 1), jnp.float32),       # running max m
            pltpu.VMEM((tq, 1), jnp.float32),       # running sum l
            pltpu.VMEM((tq, d_v_p), jnp.float32),   # output accumulator
        ],
    )

    out_p = pl.pallas_call(
        kernel,
        out_shape=jax.ShapeDtypeStruct((seq_pad, d_v_p), dtype),
        grid_spec=grid_spec,
        compiler_params=pltpu.CompilerParams(
            dimension_semantics=("parallel", "arbitrary"),
            vmem_limit_bytes=48 * 1024 * 1024,
        ),
    )(q_p, k_p, v_p)

    return out_p[:seq, :d_v]


def self_attention_ref(x, w_query, w_key, w_value, *, causal=False):
    """Pure-JAX reference mirroring the PyTorch forward."""
    keys = x @ w_key
    queries = x @ w_query
    values = x @ w_value
    attn = queries @ keys.T
    if causal:
        s = attn.shape[0]
        mask = jnp.triu(jnp.ones((s, s), dtype=bool), k=1)
        attn = jnp.where(mask, -jnp.inf, attn)
    d_out_kq = w_query.shape[1]
    weights = jax.nn.softmax(attn / (d_out_kq ** 0.5), axis=-1)
    return weights @ values


if __name__ == "__main__":
    # TODO(synk): the vocabulary/embedding lookup in the original script is host-side
    # input preparation, not part of SelfAttention.forward, so it is not a kernel.
    key = jax.random.PRNGKey(0)

    # (seq, d_in, d_out_kq, d_out_v, q_block, kv_block)
    #  - the tutorial sentence: 6 tokens, 3-dim embedding, tiny heads
    #  - a single-tile case
    #  - multi-tile cases exercising online softmax, causal tile skipping,
    #    partial-diagonal masking, length masking and tq != tk.
    configs = [
        (6, 3, 2, 4, 256, 256),
        (8, 8, 16, 16, 256, 256),
        (160, 8, 16, 16, 64, 64),
        (160, 8, 16, 16, 128, 64),
    ]

    for (seq, d_in, d_out_kq, d_out_v, qb, kb) in configs:
        kx, kq, kk, kv_, key = jax.random.split(key, 5)
        x = jax.random.normal(kx, (seq, d_in), dtype=jnp.float32)
        w_query = jax.random.uniform(kq, (d_in, d_out_kq), dtype=jnp.float32)
        w_key = jax.random.uniform(kk, (d_in, d_out_kq), dtype=jnp.float32)
        w_value = jax.random.uniform(kv_, (d_in, d_out_v), dtype=jnp.float32)

        for causal in (False, True):
            out = self_attention(x, w_query, w_key, w_value, causal=causal,
                                 q_block=qb, kv_block=kb)
            out = jax.block_until_ready(out)
            ref = self_attention_ref(x, w_query, w_key, w_value, causal=causal)
            assert out.shape == (seq, d_out_v)
            err = float(jnp.max(jnp.abs(out - ref)))
            assert jnp.allclose(out, ref, atol=1e-3, rtol=1e-3), (
                f"mismatch (seq={seq}, causal={causal}, qb={qb}, kb={kb}): "
                f"max err {err}")

    print("KERNEL_OK")
</pallas_src>

<mosaic_0001>
module attributes {stable_mosaic.version = 11 : i64} {
  func.func @_qkv_proj_kernel(%arg0: i32, %arg1: memref<8x128xf32, #tpu.memory_space<vmem>>, %arg2: memref<128x128xf32, #tpu.memory_space<vmem>>, %arg3: memref<128x128xf32, #tpu.memory_space<vmem>>, %arg4: memref<128x128xf32, #tpu.memory_space<vmem>>, %arg5: memref<8x128xf32, #tpu.memory_space<vmem>>, %arg6: memref<8x128xf32, #tpu.memory_space<vmem>>, %arg7: memref<8x128xf32, #tpu.memory_space<vmem>>) attributes {dimension_semantics = [#tpu.dimension_semantics<parallel>], iteration_bounds = array<i64: 1>, scalar_prefetch = 0 : i64, scratch_operands = 0 : i64, tpu.core_type = #tpu.core_type<tc>, window_params = [{transform_indices = @transform_0, window_bounds = array<i64: 8, 128>}, {pipeline_mode = #tpu.pipeline_mode<synchronous>, transform_indices = @transform_1, window_bounds = array<i64: 128, 128>}, {pipeline_mode = #tpu.pipeline_mode<synchronous>, transform_indices = @transform_2, window_bounds = array<i64: 128, 128>}, {pipeline_mode = #tpu.pipeline_mode<synchronous>, transform_indices = @transform_3, window_bounds = array<i64: 128, 128>}, {transform_indices = @transform_4, window_bounds = array<i64: 8, 128>}, {transform_indices = @transform_5, window_bounds = array<i64: 8, 128>}, {transform_indices = @transform_6, window_bounds = array<i64: 8, 128>}]} {
    %c0 = arith.constant 0 : index
    %c0_0 = arith.constant 0 : index
    %0 = vector.load %arg1[%c0, %c0_0] : memref<8x128xf32, #tpu.memory_space<vmem>>, vector<8x128xf32>
    %c0_1 = arith.constant 0 : index
    %c0_2 = arith.constant 0 : index
    %1 = vector.load %arg2[%c0_1, %c0_2] : memref<128x128xf32, #tpu.memory_space<vmem>>, vector<128x128xf32>
    %cst = arith.constant dense<0.000000e+00> : vector<8x128xf32>
    %2 = tpu.matmul %0, %1, %cst {dimension_numbers = #tpu.dot_dimension_numbers<[1], [0], [0], [1], [0, 0, 1, 1], [], []>} : vector<8x128xf32>, vector<128x128xf32>, vector<8x128xf32> -> vector<8x128xf32>
    %cst_3 = arith.constant 0.707106769 : f32
    %3 = vector.broadcast %cst_3 : f32 to vector<8x128xf32>
    %4 = arith.mulf %2, %3 : vector<8x128xf32>
    %c0_4 = arith.constant 0 : index
    %c0_5 = arith.constant 0 : index
    %5 = vector.load %arg5[%c0_4, %c0_5] : memref<8x128xf32, #tpu.memory_space<vmem>>, vector<8x128xf32>
    tpu.vector_store %arg5[%c0_4, %c0_5], %4 {strides = array<i32>} : memref<8x128xf32, #tpu.memory_space<vmem>>, vector<8x128xf32>,
    %c0_6 = arith.constant 0 : index
    %c0_7 = arith.constant 0 : index
    %6 = vector.load %arg3[%c0_6, %c0_7] : memref<128x128xf32, #tpu.memory_space<vmem>>, vector<128x128xf32>
    %cst_8 = arith.constant dense<0.000000e+00> : vector<8x128xf32>
    %7 = tpu.matmul %0, %6, %cst_8 {dimension_numbers = #tpu.dot_dimension_numbers<[1], [0], [0], [1], [0, 0, 1, 1], [], []>} : vector<8x128xf32>, vector<128x128xf32>, vector<8x128xf32> -> vector<8x128xf32>
    %c0_9 = arith.constant 0 : index
    %c0_10 = arith.constant 0 : index
    %8 = vector.load %arg6[%c0_9, %c0_10] : memref<8x128xf32, #tpu.memory_space<vmem>>, vector<8x128xf32>
    tpu.vector_store %arg6[%c0_9, %c0_10], %7 {strides = array<i32>} : memref<8x128xf32, #tpu.memory_space<vmem>>, vector<8x128xf32>,
    %c0_11 = arith.constant 0 : index
    %c0_12 = arith.constant 0 : index
    %9 = vector.load %arg4[%c0_11, %c0_12] : memref<128x128xf32, #tpu.memory_space<vmem>>, vector<128x128xf32>
    %cst_13 = arith.constant dense<0.000000e+00> : vector<8x128xf32>
    %10 = tpu.matmul %0, %9, %cst_13 {dimension_numbers = #tpu.dot_dimension_numbers<[1], [0], [0], [1], [0, 0, 1, 1], [], []>} : vector<8x128xf32>, vector<128x128xf32>, vector<8x128xf32> -> vector<8x128xf32>
    %c0_14 = arith.constant 0 : index
    %c0_15 = arith.constant 0 : index
    %11 = vector.load %arg7[%c0_14, %c0_15] : memref<8x128xf32, #tpu.memory_space<vmem>>, vector<8x128xf32>
    tpu.vector_store %arg7[%c0_14, %c0_15], %10 {strides = array<i32>} : memref<8x128xf32, #tpu.memory_space<vmem>>, vector<8x128xf32>,
    return
  }
  func.func @transform_0(%arg0: i32) -> (i32, i32) {
    %c0_i32 = arith.constant 0 : i32
    %c0_i32_0 = arith.constant 0 : i32
    return %arg0, %c0_i32 : i32, i32
  }
  func.func @transform_1(%arg0: i32) -> (i32, i32) {
    %c0_i32 = arith.constant 0 : i32
    %c0_i32_0 = arith.constant 0 : i32
    %c0_i32_1 = arith.constant 0 : i32
    return %c0_i32, %c0_i32_0 : i32, i32
  }
  func.func @transform_2(%arg0: i32) -> (i32, i32) {
    %c0_i32 = arith.constant 0 : i32
    %c0_i32_0 = arith.constant 0 : i32
    %c0_i32_1 = arith.constant 0 : i32
    return %c0_i32, %c0_i32_0 : i32, i32
  }
  func.func @transform_3(%arg0: i32) -> (i32, i32) {
    %c0_i32 = arith.constant 0 : i32
    %c0_i32_0 = arith.constant 0 : i32
    %c0_i32_1 = arith.constant 0 : i32
    return %c0_i32, %c0_i32_0 : i32, i32
  }
  func.func @transform_4(%arg0: i32) -> (i32, i32) {
    %c0_i32 = arith.constant 0 : i32
    %c0_i32_0 = arith.constant 0 : i32
    return %arg0, %c0_i32 : i32, i32
  }
  func.func @transform_5(%arg0: i32) -> (i32, i32) {
    %c0_i32 = arith.constant 0 : i32
    %c0_i32_0 = arith.constant 0 : i32
    return %arg0, %c0_i32 : i32, i32
  }
  func.func @transform_6(%arg0: i32) -> (i32, i32) {
    %c0_i32 = arith.constant 0 : i32
    %c0_i32_0 = arith.constant 0 : i32
    return %arg0, %c0_i32 : i32, i32
  }
}

</mosaic_0001>

<llo_original>
// kernel: tpu_custom_call.1
$region0: #{tpu_custom_call.1}
  #allocation0 [shape = 'u32[]', space=smem, size = 0x4, offset = 0x4, fixed_abs, tag = 'smem constant byte address 0x4 - core index']
  #allocation1 [shape = 'u32[144,128]{1,0:T(1,128)}', space=vmem, size = 0x12000, scoped, tag = 'internal scratch']
  %s0 = inlined_call_operand.hbm [shape: f32[8,128], index: 0, kind: input, shape index: {}]
  %s1 = inlined_call_operand.hbm [shape: f32[128,128], index: 1, kind: input, shape index: {}]
  %s2 = inlined_call_operand.hbm [shape: f32[128,128], index: 2, kind: input, shape index: {}]
  %s3 = inlined_call_operand.hbm [shape: f32[128,128], index: 3, kind: input, shape index: {}]
  %s4 = inlined_call_operand.hbm [shape: f32[8,128], index: 4, kind: output, shape index: {0}]
  %s5 = inlined_call_operand.hbm [shape: f32[8,128], index: 5, kind: output, shape index: {1}]
  %s6 = inlined_call_operand.hbm [shape: f32[8,128], index: 6, kind: output, shape index: {2}]
  %7 = xla_tuple %s4, %s5, %s6
  %s8 = sld [smem:[#allocation0]]
  $region58: #{tpu_custom_call.1} parent=0
    _
  %s10 = ssub.s32 1, %s8
  %s11 = scalar_select 0, %s10, %s8
  $region1: #{tpu_custom_call.1} parent=0
    #allocation2 [shape = 'u8[4096]{0}', space=vmem, size = 0x1000, scoped, tag = 'input window, operand 0, single buffered']
    #allocation3 [shape = 's32[1]{0}', space=sflag, size = 0x4, scoped, tag = 'scoped memory for tpu_custom_call.1']
    #allocation4 [shape = 's32[1]{0}', space=sflag, size = 0x4, scoped, tag = 'scoped memory for tpu_custom_call.1']
    #allocation5 [shape = 'u8[65536]{0}', space=vmem, size = 0x10000, scoped, tag = 'input window, operand 1, single buffered']
    #allocation6 [shape = 's32[1]{0}', space=sflag, size = 0x4, scoped, tag = 'scoped memory for tpu_custom_call.1']
    #allocation7 [shape = 'u8[65536]{0}', space=vmem, size = 0x10000, scoped, tag = 'input window, operand 2, single buffered']
    #allocation8 [shape = 'u8[65536]{0}', space=vmem, size = 0x10000, scoped, tag = 'input window, operand 3, single buffered']
    #allocation9 [shape = 's32[1]{0}', space=sflag, size = 0x4, scoped, tag = 'scoped memory for tpu_custom_call.1']
    #allocation10 [shape = 'u8[4096]{0}', space=vmem, size = 0x1000, scoped, tag = 'output window, operand 0, single buffered']
    #allocation11 [shape = 'u8[4096]{0}', space=vmem, size = 0x1000, scoped, tag = 'output window, operand 1, single buffered']
    #allocation12 [shape = 's32[1]{0}', space=sflag, size = 0x4, scoped, tag = 'scoped memory for tpu_custom_call.1']
    #allocation13 [shape = 'u8[4096]{0}', space=vmem, size = 0x1000, scoped, tag = 'output window, operand 2, single buffered']
    %12 = vsyncpa [#allocation3], 0
    %13 = vsyncpa [#allocation6], 0
    %14 = vsyncpa [#allocation9], 0
    %15 = vsyncpa [#allocation4], 0
    %16 = vsyncpa [#allocation12], 0
    // Predicated region
    $region2: #{tpu_custom_call.1} parent=1 // pred_check
      _
    $region3: #{tpu_custom_call.1} parent=1 // pred_check_branch
      %18 = sbr.rel (0) target = $region5
    $region4: #{tpu_custom_call.1} parent=1 // pred_region
      %s20 = ssub.s32 128, 128
      %21 = vsyncadd [#allocation3], %s20
      %s23 = sshll.u32 [#allocation2], 4
      %s24 = int_to_ptr.vmem [resolvable:$true] %s23
      %26 = dma.hbm_to_vmem [thread:$0]  %s0, 128, %s24, [#allocation3]
    $region5: #{tpu_custom_call.1} parent=1 // pred_fallthru
      _
    // Predicated region
    $region6: #{tpu_custom_call.1} parent=1 // pred_check
      _
    $region7: #{tpu_custom_call.1} parent=1 // pred_check_branch
      %28 = sbr.rel (0) target = $region9
    $region8: #{tpu_custom_call.1} parent=1 // pred_region
      %s30 = ssub.s32 2048, 2048
      %31 = vsyncadd [#allocation6], %s30
      %s32 = sshll.u32 [#allocation5], 4
      %s33 = int_to_ptr.vmem [resolvable:$true] %s32
      %38 = dma.hbm_to_vmem [thread:$0]  %s1, 2048, %s33, [#allocation6], 128, 128, 8
    $region9: #{tpu_custom_call.1} parent=1 // pred_fallthru
      _
    // Predicated region
    $region10: #{tpu_custom_call.1} parent=1 // pred_check
      _
    $region11: #{tpu_custom_call.1} parent=1 // pred_check_branch
      %40 = sbr.rel (0) target = $region13
    $region12: #{tpu_custom_call.1} parent=1 // pred_region
      %s42 = ssub.s32 2048, 2048
      %43 = vsyncadd [#allocation6], %s42
      %s44 = sshll.u32 [#allocation7], 4
      %s45 = int_to_ptr.vmem [resolvable:$true] %s44
      %50 = dma.hbm_to_vmem [thread:$0]  %s2, 2048, %s45, [#allocation6], 128, 128, 8
    $region13: #{tpu_custom_call.1} parent=1 // pred_fallthru
      _
    // Predicated region
    $region14: #{tpu_custom_call.1} parent=1 // pred_check
      _
    $region15: #{tpu_custom_call.1} parent=1 // pred_check_branch
      %52 = sbr.rel (0) target = $region17
    $region16: #{tpu_custom_call.1} parent=1 // pred_region
      %s54 = ssub.s32 2048, 2048
      %55 = vsyncadd [#allocation9], %s54
      %s56 = sshll.u32 [#allocation8], 4
      %s57 = int_to_ptr.vmem [resolvable:$true] %s56
      %62 = dma.hbm_to_vmem [thread:$0]  %s3, 2048, %s57, [#allocation9], 128, 128, 8
    $region17: #{tpu_custom_call.1} parent=1 // pred_fallthru
      _
    // Predicated region
    $region18: #{tpu_custom_call.1} parent=1 // pred_check
      _
    $region19: #{tpu_custom_call.1} parent=1 // pred_check_branch
      %64 = sbr.rel (0) target = $region21
    $region20: #{tpu_custom_call.1} parent=1 // pred_region
      %65 = dma.done [#allocation3], 128
    $region21: #{tpu_custom_call.1} parent=1 // pred_fallthru
      _
    // Predicated region
    $region22: #{tpu_custom_call.1} parent=1 // pred_check
      _
    $region23: #{tpu_custom_call.1} parent=1 // pred_check_branch
      %67 = sbr.rel (0) target = $region25
    $region24: #{tpu_custom_call.1} parent=1 // pred_region
      %68 = dma.done [#allocation6], 2048
    $region25: #{tpu_custom_call.1} parent=1 // pred_fallthru
      _
    // Predicated region
    $region26: #{tpu_custom_call.1} parent=1 // pred_check
      _
    $region27: #{tpu_custom_call.1} parent=1 // pred_check_branch
      %70 = sbr.rel (0) target = $region29
    $region28: #{tpu_custom_call.1} parent=1 // pred_region
      %71 = dma.done [#allocation6], 2048
    $region29: #{tpu_custom_call.1} parent=1 // pred_fallthru
      _
    // Predicated region
    $region30: #{tpu_custom_call.1} parent=1 // pred_check
      _
    $region31: #{tpu_custom_call.1} parent=1 // pred_check_branch
      %73 = sbr.rel (0) target = $region33
    $region32: #{tpu_custom_call.1} parent=1 // pred_region
      %74 = dma.done [#allocation9], 2048
    $region33: #{tpu_custom_call.1} parent=1 // pred_fallthru
      _
    %v75 = vld [vmem:[#allocation2] sm:$0xff]
    %v76 = vld [vmem:[#allocation5] sm:$0xff]
    %v77 = vld [vmem:[#allocation5 + $0x8] sm:$0xff]
    %v78 = vld [vmem:[#allocation5 + $0x10] sm:$0xff]
    %v79 = vld [vmem:[#allocation5 + $0x18] sm:$0xff]
    %v80 = vld [vmem:[#allocation5 + $0x20] sm:$0xff]
    %v81 = vld [vmem:[#allocation5 + $0x28] sm:$0xff]
    %v82 = vld [vmem:[#allocation5 + $0x30] sm:$0xff]
    %v83 = vld [vmem:[#allocation5 + $0x38] sm:$0xff]
    %v84 = vld [vmem:[#allocation5 + $0x40] sm:$0xff]
    %v85 = vld [vmem:[#allocation5 + $0x48] sm:$0xff]
    %v86 = vld [vmem:[#allocation5 + $0x50] sm:$0xff]
    %v87 = vld [vmem:[#allocation5 + $0x58] sm:$0xff]
    %v88 = vld [vmem:[#allocation5 + $0x60] sm:$0xff]
    %v89 = vld [vmem:[#allocation5 + $0x68] sm:$0xff]
    %v90 = vld [vmem:[#allocation5 + $0x70] sm:$0xff]
    %v91 = vld [vmem:[#allocation5 + $0x78] sm:$0xff]
    %92 = vmatprep.subr.mxu0 0.0
    %93 = vmatpush1.msra.mxu0 %v76
    %94 = vmatprep.subr.mxu0 0.0
    %95 = vmatpush1.msra.mxu0 %v77
    %96 = vmatprep.subr.mxu0 0.0
    %97 = vmatpush1.msra.mxu0 %v78
    %98 = vmatprep.subr.mxu0 0.0
    %99 = vmatpush1.msra.mxu0 %v79
    %100 = vmatprep.subr.mxu0 0.0
    %101 = vmatpush1.msra.mxu0 %v80
    %102 = vmatprep.subr.mxu0 0.0
    %103 = vmatpush1.msra.mxu0 %v81
    %104 = vmatprep.subr.mxu0 0.0
    %105 = vmatpush1.msra.mxu0 %v82
    %106 = vmatprep.subr.mxu0 0.0
    %107 = vmatpush1.msra.mxu0 %v83
    %108 = vmatprep.subr.mxu0 0.0
    %109 = vmatpush1.msra.mxu0 %v84
    %110 = vmatprep.subr.mxu0 0.0
    %111 = vmatpush1.msra.mxu0 %v85
    %112 = vmatprep.subr.mxu0 0.0
    %113 = vmatpush1.msra.mxu0 %v86
    %114 = vmatprep.subr.mxu0 0.0
    %115 = vmatpush1.msra.mxu0 %v87
    %116 = vmatprep.subr.mxu0 0.0
    %117 = vmatpush1.msra.mxu0 %v88
    %118 = vmatprep.subr.mxu0 0.0
    %119 = vmatpush1.msra.mxu0 %v89
    %120 = vmatprep.subr.mxu0 0.0
    %121 = vmatpush1.msra.mxu0 %v90
    %122 = vmatprep.subr.mxu0 0.0
    %123 = vmatpush1.msra.mxu0 %v91
    %124 = vmatprep.subr.mxu0 0.0
    %125 = vmatpush1.msra.mxu0 0.0
    %126 = vmatprep.subr.mxu0 0.0
    %127 = vmatpush1.msra.mxu0 0.0
    %128 = vmatprep.subr.mxu0 0.0
    %129 = vmatpush1.msra.mxu0 0.0
    %130 = vmatprep.subr.mxu0 0.0
    %131 = vmatpush1.msra.mxu0 0.0
    %132 = vmatprep.subr.mxu0 0.0
    %133 = vmatpush1.msra.mxu0 0.0
    %134 = vmatprep.subr.mxu0 0.0
    %135 = vmatpush1.msra.mxu0 0.0
    %136 = vmatprep.subr.mxu0 0.0
    %137 = vmatpush1.msra.mxu0 0.0
    %138 = vmatprep.subr.mxu0 0.0
    %139 = vmatpush1.msra.mxu0 0.0
    %140 = vmatprep.subr.mxu0 0.0
    %141 = vmatpush1.msra.mxu0 0.0
    %142 = vmatprep.subr.mxu0 0.0
    %143 = vmatpush1.msra.mxu0 0.0
    %144 = vmatprep.subr.mxu0 0.0
    %145 = vmatpush1.msra.mxu0 0.0
    %146 = vmatprep.subr.mxu0 0.0
    %147 = vmatpush1.msra.mxu0 0.0
    %148 = vmatprep.subr.mxu0 0.0
    %149 = vmatpush1.msra.mxu0 0.0
    %150 = vmatprep.subr.mxu0 0.0
    %151 = vmatpush1.msra.mxu0 0.0
    %152 = vmatprep.subr.mxu0 0.0
    %153 = vmatpush1.msra.mxu0 0.0
    %154 = vmatprep.subr.mxu0 0.0
    %155 = vmatpush1.msra.mxu0 0.0
    %156 = vmatprep.mubr.f32.mxu0 0.0
    %157 = vmatmul.mubr.f32.gmra.mrb[0].mxu0 %v75
    %v158 = vpop.f32.mrb[0].mxu0
    %v159 = vadd.f32 0.0, %v158
    %v160 = vpop.f32.mrb[0].mxu0
    %161 = vdwg.mxu0
    %v162 = vmul.f32 %v159, 0.70710677
    %163 = vst [vmem:[#allocation10] sm:$0xff] %v162
    %v164 = vld [vmem:[#allocation7] sm:$0xff]
    %v165 = vld [vmem:[#allocation7 + $0x8] sm:$0xff]
    %v166 = vld [vmem:[#allocation7 + $0x10] sm:$0xff]
    %v167 = vld [vmem:[#allocation7 + $0x18] sm:$0xff]
    %v168 = vld [vmem:[#allocation7 + $0x20] sm:$0xff]
    %v169 = vld [vmem:[#allocation7 + $0x28] sm:$0xff]
    %v170 = vld [vmem:[#allocation7 + $0x30] sm:$0xff]
    %v171 = vld [vmem:[#allocation7 + $0x38] sm:$0xff]
    %v172 = vld [vmem:[#allocation7 + $0x40] sm:$0xff]
    %v173 = vld [vmem:[#allocation7 + $0x48] sm:$0xff]
    %v174 = vld [vmem:[#allocation7 + $0x50] sm:$0xff]
    %v175 = vld [vmem:[#allocation7 + $0x58] sm:$0xff]
    %v176 = vld [vmem:[#allocation7 + $0x60] sm:$0xff]
    %v177 = vld [vmem:[#allocation7 + $0x68] sm:$0xff]
    %v178 = vld [vmem:[#allocation7 + $0x70] sm:$0xff]
    %v179 = vld [vmem:[#allocation7 + $0x78] sm:$0xff]
    %180 = vmatprep.subr.mxu0 0.0
    %181 = vmatpush1.msra.mxu0 %v164
    %182 = vmatprep.subr.mxu0 0.0
    %183 = vmatpush1.msra.mxu0 %v165
    %184 = vmatprep.subr.mxu0 0.0
    %185 = vmatpush1.msra.mxu0 %v166
    %186 = vmatprep.subr.mxu0 0.0
    %187 = vmatpush1.msra.mxu0 %v167
    %188 = vmatprep.subr.mxu0 0.0
    %189 = vmatpush1.msra.mxu0 %v168
    %190 = vmatprep.subr.mxu0 0.0
    %191 = vmatpush1.msra.mxu0 %v169
    %192 = vmatprep.subr.mxu0 0.0
    %193 = vmatpush1.msra.mxu0 %v170
    %194 = vmatprep.subr.mxu0 0.0
    %195 = vmatpush1.msra.mxu0 %v171
    %196 = vmatprep.subr.mxu0 0.0
    %197 = vmatpush1.msra.mxu0 %v172
    %198 = vmatprep.subr.mxu0 0.0
    %199 = vmatpush1.msra.mxu0 %v173
    %200 = vmatprep.subr.mxu0 0.0
    %201 = vmatpush1.msra.mxu0 %v174
    %202 = vmatprep.subr.mxu0 0.0
    %203 = vmatpush1.msra.mxu0 %v175
    %204 = vmatprep.subr.mxu0 0.0
    %205 = vmatpush1.msra.mxu0 %v176
    %206 = vmatprep.subr.mxu0 0.0
    %207 = vmatpush1.msra.mxu0 %v177
    %208 = vmatprep.subr.mxu0 0.0
    %209 = vmatpush1.msra.mxu0 %v178
    %210 = vmatprep.subr.mxu0 0.0
    %211 = vmatpush1.msra.mxu0 %v179
    %212 = vmatprep.subr.mxu0 0.0
    %213 = vmatpush1.msra.mxu0 0.0
    %214 = vmatprep.subr.mxu0 0.0
    %215 = vmatpush1.msra.mxu0 0.0
    %216 = vmatprep.subr.mxu0 0.0
    %217 = vmatpush1.msra.mxu0 0.0
    %218 = vmatprep.subr.mxu0 0.0
    %219 = vmatpush1.msra.mxu0 0.0
    %220 = vmatprep.subr.mxu0 0.0
    %221 = vmatpush1.msra.mxu0 0.0
    %222 = vmatprep.subr.mxu0 0.0
    %223 = vmatpush1.msra.mxu0 0.0
    %224 = vmatprep.subr.mxu0 0.0
    %225 = vmatpush1.msra.mxu0 0.0
    %226 = vmatprep.subr.mxu0 0.0
    %227 = vmatpush1.msra.mxu0 0.0
    %228 = vmatprep.subr.mxu0 0.0
    %229 = vmatpush1.msra.mxu0 0.0
    %230 = vmatprep.subr.mxu0 0.0
    %231 = vmatpush1.msra.mxu0 0.0
    %232 = vmatprep.subr.mxu0 0.0
    %233 = vmatpush1.msra.mxu0 0.0
    %234 = vmatprep.subr.mxu0 0.0
    %235 = vmatpush1.msra.mxu0 0.0
    %236 = vmatprep.subr.mxu0 0.0
    %237 = vmatpush1.msra.mxu0 0.0
    %238 = vmatprep.subr.mxu0 0.0
    %239 = vmatpush1.msra.mxu0 0.0
    %240 = vmatprep.subr.mxu0 0.0
    %241 = vmatpush1.msra.mxu0 0.0
    %242 = vmatprep.subr.mxu0 0.0
    %243 = vmatpush1.msra.mxu0 0.0
    %244 = vmatprep.mubr.f32.mxu0 0.0
    %245 = vmatmul.mubr.f32.gmra.mrb[0].mxu0 %v75
    %v246 = vpop.f32.mrb[0].mxu0
    %v247 = vadd.f32 0.0, %v246
    %v248 = vpop.f32.mrb[0].mxu0
    %249 = vdwg.mxu0
    %250 = vst [vmem:[#allocation11] sm:$0xff] %v247
    %v251 = vld [vmem:[#allocation8] sm:$0xff]
    %v252 = vld [vmem:[#allocation8 + $0x8] sm:$0xff]
    %v253 = vld [vmem:[#allocation8 + $0x10] sm:$0xff]
    %v254 = vld [vmem:[#allocation8 + $0x18] sm:$0xff]
    %v255 = vld [vmem:[#allocation8 + $0x20] sm:$0xff]
    %v256 = vld [vmem:[#allocation8 + $0x28] sm:$0xff]
    %v257 = vld [vmem:[#allocation8 + $0x30] sm:$0xff]
    %v258 = vld [vmem:[#allocation8 + $0x38] sm:$0xff]
    %v259 = vld [vmem:[#allocation8 + $0x40] sm:$0xff]
    %v260 = vld [vmem:[#allocation8 + $0x48] sm:$0xff]
    %v261 = vld [vmem:[#allocation8 + $0x50] sm:$0xff]
    %v262 = vld [vmem:[#allocation8 + $0x58] sm:$0xff]
    %v263 = vld [vmem:[#allocation8 + $0x60] sm:$0xff]
    %v264 = vld [vmem:[#allocation8 + $0x68] sm:$0xff]
    %v265 = vld [vmem:[#allocation8 + $0x70] sm:$0xff]
    %v266 = vld [vmem:[#allocation8 + $0x78] sm:$0xff]
    %267 = vmatprep.subr.mxu0 0.0
    %268 = vmatpush1.msra.mxu0 %v251
    %269 = vmatprep.subr.mxu0 0.0
    %270 = vmatpush1.msra.mxu0 %v252
    %271 = vmatprep.subr.mxu0 0.0
    %272 = vmatpush1.msra.mxu0 %v253
    %273 = vmatprep.subr.mxu0 0.0
    %274 = vmatpush1.msra.mxu0 %v254
    %275 = vmatprep.subr.mxu0 0.0
    %276 = vmatpush1.msra.mxu0 %v255
    %277 = vmatprep.subr.mxu0 0.0
    %278 = vmatpush1.msra.mxu0 %v256
    %279 = vmatprep.subr.mxu0 0.0
    %280 = vmatpush1.msra.mxu0 %v257
    %281 = vmatprep.subr.mxu0 0.0
    %282 = vmatpush1.msra.mxu0 %v258
    %283 = vmatprep.subr.mxu0 0.0
    %284 = vmatpush1.msra.mxu0 %v259
    %285 = vmatprep.subr.mxu0 0.0
    %286 = vmatpush1.msra.mxu0 %v260
    %287 = vmatprep.subr.mxu0 0.0
    %288 = vmatpush1.msra.mxu0 %v261
    %289 = vmatprep.subr.mxu0 0.0
    %290 = vmatpush1.msra.mxu0 %v262
    %291 = vmatprep.subr.mxu0 0.0
    %292 = vmatpush1.msra.mxu0 %v263
    %293 = vmatprep.subr.mxu0 0.0
    %294 = vmatpush1.msra.mxu0 %v264
    %295 = vmatprep.subr.mxu0 0.0
    %296 = vmatpush1.msra.mxu0 %v265
    %297 = vmatprep.subr.mxu0 0.0
    %298 = vmatpush1.msra.mxu0 %v266
    %299 = vmatprep.subr.mxu0 0.0
    %300 = vmatpush1.msra.mxu0 0.0
    %301 = vmatprep.subr.mxu0 0.0
    %302 = vmatpush1.msra.mxu0 0.0
    %303 = vmatprep.subr.mxu0 0.0
    %304 = vmatpush1.msra.mxu0 0.0
    %305 = vmatprep.subr.mxu0 0.0
    %306 = vmatpush1.msra.mxu0 0.0
    %307 = vmatprep.subr.mxu0 0.0
    %308 = vmatpush1.msra.mxu0 0.0
    %309 = vmatprep.subr.mxu0 0.0
    %310 = vmatpush1.msra.mxu0 0.0
    %311 = vmatprep.subr.mxu0 0.0
    %312 = vmatpush1.msra.mxu0 0.0
    %313 = vmatprep.subr.mxu0 0.0
    %314 = vmatpush1.msra.mxu0 0.0
    %315 = vmatprep.subr.mxu0 0.0
    %316 = vmatpush1.msra.mxu0 0.0
    %317 = vmatprep.subr.mxu0 0.0
    %318 = vmatpush1.msra.mxu0 0.0
    %319 = vmatprep.subr.mxu0 0.0
    %320 = vmatpush1.msra.mxu0 0.0
    %321 = vmatprep.subr.mxu0 0.0
    %322 = vmatpush1.msra.mxu0 0.0
    %323 = vmatprep.subr.mxu0 0.0
    %324 = vmatpush1.msra.mxu0 0.0
    %325 = vmatprep.subr.mxu0 0.0
    %326 = vmatpush1.msra.mxu0 0.0
    %327 = vmatprep.subr.mxu0 0.0
    %328 = vmatpush1.msra.mxu0 0.0
    %329 = vmatprep.subr.mxu0 0.0
    %330 = vmatpush1.msra.mxu0 0.0
    %331 = vmatprep.mubr.f32.mxu0 0.0
    %332 = vmatmul.mubr.f32.gmra.mrb[0].mxu0 %v75
    %v333 = vpop.f32.mrb[0].mxu0
    %v334 = vadd.f32 0.0, %v333
    %v335 = vpop.f32.mrb[0].mxu0
    %336 = vdwg.mxu0
    %337 = vst [vmem:[#allocation13] sm:$0xff] %v334
    // Predicated region
    $region34: #{tpu_custom_call.1} parent=1 // pred_check
      _
    $region35: #{tpu_custom_call.1} parent=1 // pred_check_branch
      %339 = sbr.rel (0) target = $region37
    $region36: #{tpu_custom_call.1} parent=1 // pred_region
      %s341 = ssub.s32 128, 128
      %342 = vsyncadd [#allocation4], %s341
      %s344 = sshll.u32 [#allocation10], 4
      %s345 = int_to_ptr.vmem [resolvable:$true] %s344
      %347 = dma.vmem_to_hbm [thread:$0]  %s345, 128, %s4, [#allocation4]
    $region37: #{tpu_custom_call.1} parent=1 // pred_fallthru
      _
    // Predicated region
    $region38: #{tpu_custom_call.1} parent=1 // pred_check
      _
    $region39: #{tpu_custom_call.1} parent=1 // pred_check_branch
      %349 = sbr.rel (0) target = $region41
    $region40: #{tpu_custom_call.1} parent=1 // pred_region
      %s351 = ssub.s32 128, 128
      %352 = vsyncadd [#allocation12], %s351
      %s354 = sshll.u32 [#allocation11], 4
      %s355 = int_to_ptr.vmem [resolvable:$true] %s354
      %357 = dma.vmem_to_hbm [thread:$0]  %s355, 128, %s5, [#allocation12]
    $region41: #{tpu_custom_call.1} parent=1 // pred_fallthru
      _
    // Predicated region
    $region42: #{tpu_custom_call.1} parent=1 // pred_check
      _
    $region43: #{tpu_custom_call.1} parent=1 // pred_check_branch
      %359 = sbr.rel (0) target = $region45
    $region44: #{tpu_custom_call.1} parent=1 // pred_region
      %s361 = ssub.s32 128, 128
      %362 = vsyncadd [#allocation12], %s361
      %s364 = sshll.u32 [#allocation13], 4
      %s365 = int_to_ptr.vmem [resolvable:$true] %s364
      %367 = dma.vmem_to_hbm [thread:$0]  %s365, 128, %s6, [#allocation12]
    $region45: #{tpu_custom_call.1} parent=1 // pred_fallthru
      _
    // Predicated region
    $region46: #{tpu_custom_call.1} parent=1 // pred_check
      _
    $region47: #{tpu_custom_call.1} parent=1 // pred_check_branch
      %369 = sbr.rel (0) target = $region49
    $region48: #{tpu_custom_call.1} parent=1 // pred_region
      %370 = dma.done [#allocation4], 128
    $region49: #{tpu_custom_call.1} parent=1 // pred_fallthru
      _
    // Predicated region
    $region50: #{tpu_custom_call.1} parent=1 // pred_check
      _
    $region51: #{tpu_custom_call.1} parent=1 // pred_check_branch
      %372 = sbr.rel (0) target = $region53
    $region52: #{tpu_custom_call.1} parent=1 // pred_region
      %373 = dma.done [#allocation12], 128
    $region53: #{tpu_custom_call.1} parent=1 // pred_fallthru
      _
    // Predicated region
    $region54: #{tpu_custom_call.1} parent=1 // pred_check
      _
    $region55: #{tpu_custom_call.1} parent=1 // pred_check_branch
      %375 = sbr.rel (0) target = $region57
    $region56: #{tpu_custom_call.1} parent=1 // pred_region
      %376 = dma.done [#allocation12], 128
    $region57: #{tpu_custom_call.1} parent=1 // pred_fallthru
      _
    %377 = vsyncpa [#allocation3], 1
    %378 = vsyncpa [#allocation6], 1
    %379 = vsyncpa [#allocation9], 1
    %380 = vsyncpa [#allocation4], 1
    %381 = vsyncpa [#allocation12], 1

</llo_original>
